<compile_context>
chip_gen: v5e
topology: v5e:2x2
jax: 0.10.0
libtpu: 0.0.40
codegen_flags: <defaults>
</compile_context>

<pallas_src>
import jax
import jax.numpy as jnp
from jax.experimental import pallas as pl
from jax.experimental.pallas import tpu as pltpu

MAX_WALLS = 120
WALL_FEATURES_PER_WALL = 2
TOTAL_WALL_FEATURES = MAX_WALLS * WALL_FEATURES_PER_WALL  # unused in forward()

BN_EPS = 1e-5
LEAKY_SLOPE = 0.1

# 128-lane-aligned offsets/lengths of each per-channel-parameter segment in
# the packed (2, PACK_WIDTH) array.  Row 0: gammas (+ folded head bias),
# row 1: betas.
_BN_SEGMENTS = (
    (0, 256),     # feature BN 0
    (256, 256),   # feature BN 1
    (512, 128),   # feature BN 2
    (640, 64),    # feature BN 3                   (padded to 128 lanes)
    (768, 128),   # fused stream BN layer 1        (value 64 || advantage 64)
    (896, 64),    # fused stream BN layer 2        (value 32 || advantage 32)
)
_HEAD_BIAS_OFF = 1024
PACK_WIDTH = 1152


# ----------------------------- kernel ---------------------------------------

def dueling_dqn_kernel(x_ref, w0_ref, w1_ref, w2_ref, w3_ref,
                       ws1_ref, ws2_ref, whq_ref, pp_ref, out_ref):
    batch = x_ref.shape[0]
    n_act = out_ref.shape[1]
    inv_b = 1.0 / batch

    def mm(h, w_ref):
        # bf16 x bf16 -> f32 accumulate on the MXU (weights pre-cast).
        return jnp.dot(h.astype(jnp.bfloat16), w_ref[...],
                       preferred_element_type=jnp.float32)

    def bn_lrelu(h, seg):
        off, d = seg
        gamma = pp_ref[0:1, off:off + d]
        beta = pp_ref[1:2, off:off + d]
        # Single-pass training-mode BatchNorm1d (biased batch variance),
        # gamma/beta folded into one scale/shift pass; rsqrt on the EUP.
        mean = jnp.sum(h, axis=0, keepdims=True) * inv_b
        ex2 = jnp.sum(h * h, axis=0, keepdims=True) * inv_b
        var = jnp.maximum(ex2 - mean * mean, 0.0)
        scale = gamma * jax.lax.rsqrt(var + BN_EPS)
        shift = beta - mean * scale
        h = h * scale + shift
        return jnp.where(h > 0, h, LEAKY_SLOPE * h)

    # feature_network: 4 x (Linear(no bias) -> BN -> LeakyReLU(0.1))
    h = x_ref[...]
    h = bn_lrelu(mm(h, w0_ref), _BN_SEGMENTS[0])
    h = bn_lrelu(mm(h, w1_ref), _BN_SEGMENTS[1])
    h = bn_lrelu(mm(h, w2_ref), _BN_SEGMENTS[2])
    feats = bn_lrelu(mm(h, w3_ref), _BN_SEGMENTS[3])          # (B, 64)

    # Fused value/advantage streams (lane-dense).
    s1 = bn_lrelu(mm(feats, ws1_ref), _BN_SEGMENTS[4])        # (B, 128)
    s2 = bn_lrelu(mm(s1, ws2_ref), _BN_SEGMENTS[5])           # (B, 64)

    # Folded head: one small f32 matmul that directly produces the dueling
    # Q-values (value broadcast, advantage mean-centering and both biases are
    # already folded into whq / q_bias in the wrapper).
    q_bias = pp_ref[0:1, _HEAD_BIAS_OFF:_HEAD_BIAS_OFF + n_act]
    out_ref[...] = jnp.dot(s2, whq_ref[...],
                           preferred_element_type=jnp.float32) + q_bias


# ----------------------------- params / packing ------------------------------

def init_params(key, input_size, output_size):
    """Parameters in the original PyTorch layout (10 linears, 8 BNs)."""
    lin_dims = [
        (input_size, 256), (256, 256), (256, 128), (128, 64),   # feature_network
        (64, 64), (64, 32), (32, 1),                            # value_stream
        (64, 64), (64, 32), (32, output_size),                  # advantage_stream
    ]
    bn_dims = [256, 256, 128, 64,   # feature_network
               64, 32,              # value_stream
               64, 32]              # advantage_stream

    linears = []
    for fan_in, fan_out in lin_dims:
        key, sub = jax.random.split(key)
        limit = (6.0 / (fan_in + fan_out)) ** 0.5            # xavier_uniform_
        w_t = jax.random.uniform(sub, (fan_in, fan_out), jnp.float32,
                                 minval=-limit, maxval=limit)
        b = jnp.zeros((fan_out,), jnp.float32)                # constant_(bias, 0)
        linears.append((w_t, b))

    bns = [(jnp.ones((d,), jnp.float32), jnp.zeros((d,), jnp.float32))
           for d in bn_dims]
    return linears, bns


def _pad_lanes(v, width):
    return jnp.pad(v, (0, width - v.shape[0]))


def pack_params(linears, bns, output_size):
    """Fuse/pack the PyTorch-layout params into the kernel's 8 input arrays."""
    (w0, _), (w1, _), (w2, _), (w3, _) = linears[0:4]
    (wv1, _), (wv2, _), (wv3, bv3) = linears[4:7]
    (wa1, _), (wa2, _), (wa3, ba3) = linears[7:10]

    # Fused stream layer 1: (64, 128) = [value | advantage].
    ws1 = jnp.concatenate([wv1, wa1], axis=1)
    # Fused stream layer 2: block-diagonal (128, 64).
    ws2 = jnp.zeros((128, 64), jnp.float32)
    ws2 = ws2.at[:64, :32].set(wv2).at[64:, 32:].set(wa2)

    # Folded dueling head (f32, exact linear reassociation):
    #   q_i = s2[:, :32] @ wv3 + bv3 + (a_i - mean_j a_j)
    #       = s2 @ Wq[:, i] + bq_i
    wa3_centered = wa3 - jnp.mean(wa3, axis=1, keepdims=True)
    whq = jnp.zeros((64, output_size), jnp.float32)
    whq = whq.at[:32, :].set(jnp.broadcast_to(wv3, (32, output_size)))
    whq = whq.at[32:, :].set(wa3_centered)
    q_bias = bv3 + ba3 - jnp.mean(ba3)                        # (A,)

    # Packed per-channel params: row 0 = gammas (+ folded head bias),
    # row 1 = betas.
    g = [bn[0] for bn in bns]
    b = [bn[1] for bn in bns]
    gamma_segs = [g[0], g[1], g[2], _pad_lanes(g[3], 128),
                  jnp.concatenate([g[4], g[6]]),
                  _pad_lanes(jnp.concatenate([g[5], g[7]]), 128),
                  _pad_lanes(q_bias, 128)]
    beta_segs = [b[0], b[1], b[2], _pad_lanes(b[3], 128),
                 jnp.concatenate([b[4], b[6]]),
                 _pad_lanes(jnp.concatenate([b[5], b[7]]), 128),
                 jnp.zeros((128,), jnp.float32)]
    packed = jnp.stack([jnp.concatenate(gamma_segs),
                        jnp.concatenate(beta_segs)])          # (2, PACK_WIDTH)
    assert packed.shape == (2, PACK_WIDTH)

    weights = tuple(w.astype(jnp.bfloat16)
                    for w in (w0, w1, w2, w3, ws1, ws2)) + (whq,)  # head stays f32
    return weights, packed


# ----------------------------- wrapper ---------------------------------------

def dueling_dqn_forward(x, weights, packed, output_size):
    batch = x.shape[0]
    vmem = pl.BlockSpec(memory_space=pltpu.MemorySpace.VMEM)
    return pl.pallas_call(
        dueling_dqn_kernel,
        out_shape=jax.ShapeDtypeStruct((batch, output_size), jnp.float32),
        in_specs=[vmem] * (1 + len(weights) + 1),
        out_specs=vmem,
    )(x, *weights, packed)


# ----------------------------- reference (plain JAX) -------------------------

def reference_forward(x, linears, bns):
    # Mirrors the module semantics (biases included, two-pass BN, explicit
    # dueling combine) with the same precision choices as the kernel:
    # bf16 matmuls / f32 accumulation everywhere except the two final head
    # Linears, which run in f32.
    def mm(h, w):
        return jnp.dot(h.astype(jnp.bfloat16), w.astype(jnp.bfloat16),
                       preferred_element_type=jnp.float32)

    def bn(h, g, be):
        m = jnp.mean(h, axis=0, keepdims=True)
        v = jnp.mean((h - m) ** 2, axis=0, keepdims=True)
        return g * (h - m) * jax.lax.rsqrt(v + BN_EPS) + be

    def lrelu(h):
        return jnp.where(h > 0, h, LEAKY_SLOPE * h)

    h = x
    for i in range(4):
        w, b = linears[i]; g, be = bns[i]
        h = lrelu(bn(mm(h, w) + b, g, be))
    feats = h

    v = feats
    for li, bi in ((4, 4), (5, 5)):
        w, b = linears[li]; g, be = bns[bi]
        v = lrelu(bn(mm(v, w) + b, g, be))
    w, b = linears[6]
    v = jnp.dot(v, w, preferred_element_type=jnp.float32) + b

    a = feats
    for li, bi in ((7, 6), (8, 7)):
        w, b = linears[li]; g, be = bns[bi]
        a = lrelu(bn(mm(a, w) + b, g, be))
    w, b = linears[9]
    a = jnp.dot(a, w, preferred_element_type=jnp.float32) + b

    return v + (a - jnp.mean(a, axis=1, keepdims=True))


# ----------------------------- main ------------------------------------------

if __name__ == "__main__":
    INPUT_SIZE = 32
    OUTPUT_SIZE = 4
    BATCH = 8    # demo-sized; stack >=128/256 rows per call in production

    key = jax.random.PRNGKey(0)
    key, xkey = jax.random.split(key)
    x = jax.random.normal(xkey, (BATCH, INPUT_SIZE), jnp.float32)

    linears, bns = init_params(key, INPUT_SIZE, OUTPUT_SIZE)
    weights, packed = pack_params(linears, bns, OUTPUT_SIZE)

    q = dueling_dqn_forward(x, weights, packed, OUTPUT_SIZE)
    q = jax.block_until_ready(q)

    q_ref = reference_forward(x, linears, bns)
    assert q.shape == (BATCH, OUTPUT_SIZE)
    max_diff = float(jnp.max(jnp.abs(q - q_ref)))
    assert jnp.allclose(q, q_ref, atol=5e-3, rtol=5e-3), (
        f"mismatch vs reference, max abs diff = {max_diff}")

    # TODO(synk): wall_encoder_stream exists in __init__ but is never used by
    # forward(), so it is intentionally not implemented.
    print("KERNEL_OK")
</pallas_src>

<mosaic_0001>
module attributes {stable_mosaic.version = 11 : i64} {
  func.func @dueling_dqn_kernel(%arg0: memref<8x32xf32, #tpu.memory_space<vmem>>, %arg1: memref<32x256xbf16, #tpu.memory_space<vmem>>, %arg2: memref<256x256xbf16, #tpu.memory_space<vmem>>, %arg3: memref<256x128xbf16, #tpu.memory_space<vmem>>, %arg4: memref<128x64xbf16, #tpu.memory_space<vmem>>, %arg5: memref<64x128xbf16, #tpu.memory_space<vmem>>, %arg6: memref<128x64xbf16, #tpu.memory_space<vmem>>, %arg7: memref<64x4xf32, #tpu.memory_space<vmem>>, %arg8: memref<2x1152xf32, #tpu.memory_space<vmem>>, %arg9: memref<8x4xf32, #tpu.memory_space<vmem>>) attributes {dimension_semantics = [], scalar_prefetch = 0 : i64, scratch_operands = 0 : i64, tpu.core_type = #tpu.core_type<tc>} {
    %c0 = arith.constant 0 : index
    %c0_0 = arith.constant 0 : index
    %0 = vector.load %arg0[%c0, %c0_0] : memref<8x32xf32, #tpu.memory_space<vmem>>, vector<8x32xf32>
    %1 = arith.truncf %0 : vector<8x32xf32> to vector<8x32xbf16>
    %c0_1 = arith.constant 0 : index
    %c0_2 = arith.constant 0 : index
    %2 = vector.load %arg1[%c0_1, %c0_2] : memref<32x256xbf16, #tpu.memory_space<vmem>>, vector<32x256xbf16>
    %cst = arith.constant dense<0.000000e+00> : vector<8x256xf32>
    %3 = tpu.matmul %1, %2, %cst {dimension_numbers = #tpu.dot_dimension_numbers<[1], [0], [0], [1], [0, 0, 1, 1], [], []>} : vector<8x32xbf16>, vector<32x256xbf16>, vector<8x256xf32> -> vector<8x256xf32>
    %c0_3 = arith.constant 0 : index
    %c0_4 = arith.constant 0 : index
    %4 = vector.load %arg8[%c0_3, %c0_4] : memref<2x1152xf32, #tpu.memory_space<vmem>>, vector<1x256xf32>
    %c1 = arith.constant 1 : index
    %c0_5 = arith.constant 0 : index
    %5 = vector.load %arg8[%c1, %c0_5] : memref<2x1152xf32, #tpu.memory_space<vmem>>, vector<1x256xf32>
    %cst_6 = arith.constant dense<0.000000e+00> : vector<256xf32>
    %6 = vector.multi_reduction <add>, %3, %cst_6 [0] : vector<8x256xf32> to vector<256xf32>
    %7 = vector.shape_cast %6 : vector<256xf32> to vector<1x256xf32>
    %cst_7 = arith.constant 1.250000e-01 : f32
    %8 = vector.broadcast %cst_7 : f32 to vector<1x256xf32>
    %9 = arith.mulf %7, %8 : vector<1x256xf32>
    %10 = arith.mulf %3, %3 : vector<8x256xf32>
    %cst_8 = arith.constant dense<0.000000e+00> : vector<256xf32>
    %11 = vector.multi_reduction <add>, %10, %cst_8 [0] : vector<8x256xf32> to vector<256xf32>
    %12 = vector.shape_cast %11 : vector<256xf32> to vector<1x256xf32>
    %cst_9 = arith.constant 1.250000e-01 : f32
    %13 = vector.broadcast %cst_9 : f32 to vector<1x256xf32>
    %14 = arith.mulf %12, %13 : vector<1x256xf32>
    %15 = arith.mulf %9, %9 : vector<1x256xf32>
    %16 = arith.subf %14, %15 : vector<1x256xf32>
    %cst_10 = arith.constant 0.000000e+00 : f32
    %17 = vector.broadcast %cst_10 : f32 to vector<1x256xf32>
    %18 = arith.maximumf %16, %17 : vector<1x256xf32>
    %cst_11 = arith.constant 9.99999974E-6 : f32
    %19 = vector.broadcast %cst_11 : f32 to vector<1x256xf32>
    %20 = arith.addf %18, %19 : vector<1x256xf32>
    %21 = math.rsqrt %20 : vector<1x256xf32>
    %22 = arith.mulf %4, %21 : vector<1x256xf32>
    %23 = arith.mulf %9, %22 : vector<1x256xf32>
    %24 = arith.subf %5, %23 : vector<1x256xf32>
    %25 = vector.broadcast %22 : vector<1x256xf32> to vector<8x256xf32>
    %26 = arith.mulf %3, %25 : vector<8x256xf32>
    %27 = vector.broadcast %24 : vector<1x256xf32> to vector<8x256xf32>
    %28 = arith.addf %26, %27 : vector<8x256xf32>
    %cst_12 = arith.constant 0.000000e+00 : f32
    %29 = vector.broadcast %cst_12 : f32 to vector<8x256xf32>
    %30 = arith.cmpf ogt, %28, %29 : vector<8x256xf32>
    %cst_13 = arith.constant 1.000000e-01 : f32
    %31 = vector.broadcast %cst_13 : f32 to vector<8x256xf32>
    %32 = arith.mulf %31, %28 : vector<8x256xf32>
    %33 = arith.select %30, %28, %32 : vector<8x256xi1>, vector<8x256xf32>
    %34 = arith.truncf %33 : vector<8x256xf32> to vector<8x256xbf16>
    %c0_14 = arith.constant 0 : index
    %c0_15 = arith.constant 0 : index
    %35 = vector.load %arg2[%c0_14, %c0_15] : memref<256x256xbf16, #tpu.memory_space<vmem>>, vector<256x256xbf16>
    %cst_16 = arith.constant dense<0.000000e+00> : vector<8x256xf32>
    %36 = tpu.matmul %34, %35, %cst_16 {dimension_numbers = #tpu.dot_dimension_numbers<[1], [0], [0], [1], [0, 0, 1, 1], [], []>} : vector<8x256xbf16>, vector<256x256xbf16>, vector<8x256xf32> -> vector<8x256xf32>
    %c0_17 = arith.constant 0 : index
    %c256 = arith.constant 256 : index
    %37 = vector.load %arg8[%c0_17, %c256] : memref<2x1152xf32, #tpu.memory_space<vmem>>, vector<1x256xf32>
    %c1_18 = arith.constant 1 : index
    %c256_19 = arith.constant 256 : index
    %38 = vector.load %arg8[%c1_18, %c256_19] : memref<2x1152xf32, #tpu.memory_space<vmem>>, vector<1x256xf32>
    %cst_20 = arith.constant dense<0.000000e+00> : vector<256xf32>
    %39 = vector.multi_reduction <add>, %36, %cst_20 [0] : vector<8x256xf32> to vector<256xf32>
    %40 = vector.shape_cast %39 : vector<256xf32> to vector<1x256xf32>
    %cst_21 = arith.constant 1.250000e-01 : f32
    %41 = vector.broadcast %cst_21 : f32 to vector<1x256xf32>
    %42 = arith.mulf %40, %41 : vector<1x256xf32>
    %43 = arith.mulf %36, %36 : vector<8x256xf32>
    %cst_22 = arith.constant dense<0.000000e+00> : vector<256xf32>
    %44 = vector.multi_reduction <add>, %43, %cst_22 [0] : vector<8x256xf32> to vector<256xf32>
    %45 = vector.shape_cast %44 : vector<256xf32> to vector<1x256xf32>
    %cst_23 = arith.constant 1.250000e-01 : f32
    %46 = vector.broadcast %cst_23 : f32 to vector<1x256xf32>
    %47 = arith.mulf %45, %46 : vector<1x256xf32>
    %48 = arith.mulf %42, %42 : vector<1x256xf32>
    %49 = arith.subf %47, %48 : vector<1x256xf32>
    %cst_24 = arith.constant 0.000000e+00 : f32
    %50 = vector.broadcast %cst_24 : f32 to vector<1x256xf32>
    %51 = arith.maximumf %49, %50 : vector<1x256xf32>
    %cst_25 = arith.constant 9.99999974E-6 : f32
    %52 = vector.broadcast %cst_25 : f32 to vector<1x256xf32>
    %53 = arith.addf %51, %52 : vector<1x256xf32>
    %54 = math.rsqrt %53 : vector<1x256xf32>
    %55 = arith.mulf %37, %54 : vector<1x256xf32>
    %56 = arith.mulf %42, %55 : vector<1x256xf32>
    %57 = arith.subf %38, %56 : vector<1x256xf32>
    %58 = vector.broadcast %55 : vector<1x256xf32> to vector<8x256xf32>
    %59 = arith.mulf %36, %58 : vector<8x256xf32>
    %60 = vector.broadcast %57 : vector<1x256xf32> to vector<8x256xf32>
    %61 = arith.addf %59, %60 : vector<8x256xf32>
    %cst_26 = arith.constant 0.000000e+00 : f32
    %62 = vector.broadcast %cst_26 : f32 to vector<8x256xf32>
    %63 = arith.cmpf ogt, %61, %62 : vector<8x256xf32>
    %cst_27 = arith.constant 1.000000e-01 : f32
    %64 = vector.broadcast %cst_27 : f32 to vector<8x256xf32>
    %65 = arith.mulf %64, %61 : vector<8x256xf32>
    %66 = arith.select %63, %61, %65 : vector<8x256xi1>, vector<8x256xf32>
    %67 = arith.truncf %66 : vector<8x256xf32> to vector<8x256xbf16>
    %c0_28 = arith.constant 0 : index
    %c0_29 = arith.constant 0 : index
    %68 = vector.load %arg3[%c0_28, %c0_29] : memref<256x128xbf16, #tpu.memory_space<vmem>>, vector<256x128xbf16>
    %cst_30 = arith.constant dense<0.000000e+00> : vector<8x128xf32>
    %69 = tpu.matmul %67, %68, %cst_30 {dimension_numbers = #tpu.dot_dimension_numbers<[1], [0], [0], [1], [0, 0, 1, 1], [], []>} : vector<8x256xbf16>, vector<256x128xbf16>, vector<8x128xf32> -> vector<8x128xf32>
    %c0_31 = arith.constant 0 : index
    %c512 = arith.constant 512 : index
    %70 = vector.load %arg8[%c0_31, %c512] : memref<2x1152xf32, #tpu.memory_space<vmem>>, vector<1x128xf32>
    %c1_32 = arith.constant 1 : index
    %c512_33 = arith.constant 512 : index
    %71 = vector.load %arg8[%c1_32, %c512_33] : memref<2x1152xf32, #tpu.memory_space<vmem>>, vector<1x128xf32>
    %cst_34 = arith.constant dense<0.000000e+00> : vector<128xf32>
    %72 = vector.multi_reduction <add>, %69, %cst_34 [0] : vector<8x128xf32> to vector<128xf32>
    %73 = vector.shape_cast %72 : vector<128xf32> to vector<1x128xf32>
    %cst_35 = arith.constant 1.250000e-01 : f32
    %74 = vector.broadcast %cst_35 : f32 to vector<1x128xf32>
    %75 = arith.mulf %73, %74 : vector<1x128xf32>
    %76 = arith.mulf %69, %69 : vector<8x128xf32>
    %cst_36 = arith.constant dense<0.000000e+00> : vector<128xf32>
    %77 = vector.multi_reduction <add>, %76, %cst_36 [0] : vector<8x128xf32> to vector<128xf32>
    %78 = vector.shape_cast %77 : vector<128xf32> to vector<1x128xf32>
    %cst_37 = arith.constant 1.250000e-01 : f32
    %79 = vector.broadcast %cst_37 : f32 to vector<1x128xf32>
    %80 = arith.mulf %78, %79 : vector<1x128xf32>
    %81 = arith.mulf %75, %75 : vector<1x128xf32>
    %82 = arith.subf %80, %81 : vector<1x128xf32>
    %cst_38 = arith.constant 0.000000e+00 : f32
    %83 = vector.broadcast %cst_38 : f32 to vector<1x128xf32>
    %84 = arith.maximumf %82, %83 : vector<1x128xf32>
    %cst_39 = arith.constant 9.99999974E-6 : f32
    %85 = vector.broadcast %cst_39 : f32 to vector<1x128xf32>
    %86 = arith.addf %84, %85 : vector<1x128xf32>
    %87 = math.rsqrt %86 : vector<1x128xf32>
    %88 = arith.mulf %70, %87 : vector<1x128xf32>
    %89 = arith.mulf %75, %88 : vector<1x128xf32>
    %90 = arith.subf %71, %89 : vector<1x128xf32>
    %91 = vector.broadcast %88 : vector<1x128xf32> to vector<8x128xf32>
    %92 = arith.mulf %69, %91 : vector<8x128xf32>
    %93 = vector.broadcast %90 : vector<1x128xf32> to vector<8x128xf32>
    %94 = arith.addf %92, %93 : vector<8x128xf32>
    %cst_40 = arith.constant 0.000000e+00 : f32
    %95 = vector.broadcast %cst_40 : f32 to vector<8x128xf32>
    %96 = arith.cmpf ogt, %94, %95 : vector<8x128xf32>
    %cst_41 = arith.constant 1.000000e-01 : f32
    %97 = vector.broadcast %cst_41 : f32 to vector<8x128xf32>
    %98 = arith.mulf %97, %94 : vector<8x128xf32>
    %99 = arith.select %96, %94, %98 : vector<8x128xi1>, vector<8x128xf32>
    %100 = arith.truncf %99 : vector<8x128xf32> to vector<8x128xbf16>
    %c0_42 = arith.constant 0 : index
    %c0_43 = arith.constant 0 : index
    %101 = vector.load %arg4[%c0_42, %c0_43] : memref<128x64xbf16, #tpu.memory_space<vmem>>, vector<128x64xbf16>
    %cst_44 = arith.constant dense<0.000000e+00> : vector<8x64xf32>
    %102 = tpu.matmul %100, %101, %cst_44 {dimension_numbers = #tpu.dot_dimension_numbers<[1], [0], [0], [1], [0, 0, 1, 1], [], []>} : vector<8x128xbf16>, vector<128x64xbf16>, vector<8x64xf32> -> vector<8x64xf32>
    %c0_45 = arith.constant 0 : index
    %c640 = arith.constant 640 : index
    %103 = vector.load %arg8[%c0_45, %c640] : memref<2x1152xf32, #tpu.memory_space<vmem>>, vector<1x64xf32>
    %c1_46 = arith.constant 1 : index
    %c640_47 = arith.constant 640 : index
    %104 = vector.load %arg8[%c1_46, %c640_47] : memref<2x1152xf32, #tpu.memory_space<vmem>>, vector<1x64xf32>
    %cst_48 = arith.constant dense<0.000000e+00> : vector<64xf32>
    %105 = vector.multi_reduction <add>, %102, %cst_48 [0] : vector<8x64xf32> to vector<64xf32>
    %106 = vector.shape_cast %105 : vector<64xf32> to vector<1x64xf32>
    %cst_49 = arith.constant 1.250000e-01 : f32
    %107 = vector.broadcast %cst_49 : f32 to vector<1x64xf32>
    %108 = arith.mulf %106, %107 : vector<1x64xf32>
    %109 = arith.mulf %102, %102 : vector<8x64xf32>
    %cst_50 = arith.constant dense<0.000000e+00> : vector<64xf32>
    %110 = vector.multi_reduction <add>, %109, %cst_50 [0] : vector<8x64xf32> to vector<64xf32>
    %111 = vector.shape_cast %110 : vector<64xf32> to vector<1x64xf32>
    %cst_51 = arith.constant 1.250000e-01 : f32
    %112 = vector.broadcast %cst_51 : f32 to vector<1x64xf32>
    %113 = arith.mulf %111, %112 : vector<1x64xf32>
    %114 = arith.mulf %108, %108 : vector<1x64xf32>
    %115 = arith.subf %113, %114 : vector<1x64xf32>
    %cst_52 = arith.constant 0.000000e+00 : f32
    %116 = vector.broadcast %cst_52 : f32 to vector<1x64xf32>
    %117 = arith.maximumf %115, %116 : vector<1x64xf32>
    %cst_53 = arith.constant 9.99999974E-6 : f32
    %118 = vector.broadcast %cst_53 : f32 to vector<1x64xf32>
    %119 = arith.addf %117, %118 : vector<1x64xf32>
    %120 = math.rsqrt %119 : vector<1x64xf32>
    %121 = arith.mulf %103, %120 : vector<1x64xf32>
    %122 = arith.mulf %108, %121 : vector<1x64xf32>
    %123 = arith.subf %104, %122 : vector<1x64xf32>
    %124 = vector.broadcast %121 : vector<1x64xf32> to vector<8x64xf32>
    %125 = arith.mulf %102, %124 : vector<8x64xf32>
    %126 = vector.broadcast %123 : vector<1x64xf32> to vector<8x64xf32>
    %127 = arith.addf %125, %126 : vector<8x64xf32>
    %cst_54 = arith.constant 0.000000e+00 : f32
    %128 = vector.broadcast %cst_54 : f32 to vector<8x64xf32>
    %129 = arith.cmpf ogt, %127, %128 : vector<8x64xf32>
    %cst_55 = arith.constant 1.000000e-01 : f32
    %130 = vector.broadcast %cst_55 : f32 to vector<8x64xf32>
    %131 = arith.mulf %130, %127 : vector<8x64xf32>
    %132 = arith.select %129, %127, %131 : vector<8x64xi1>, vector<8x64xf32>
    %133 = arith.truncf %132 : vector<8x64xf32> to vector<8x64xbf16>
    %c0_56 = arith.constant 0 : index
    %c0_57 = arith.constant 0 : index
    %134 = vector.load %arg5[%c0_56, %c0_57] : memref<64x128xbf16, #tpu.memory_space<vmem>>, vector<64x128xbf16>
    %cst_58 = arith.constant dense<0.000000e+00> : vector<8x128xf32>
    %135 = tpu.matmul %133, %134, %cst_58 {dimension_numbers = #tpu.dot_dimension_numbers<[1], [0], [0], [1], [0, 0, 1, 1], [], []>} : vector<8x64xbf16>, vector<64x128xbf16>, vector<8x128xf32> -> vector<8x128xf32>
    %c0_59 = arith.constant 0 : index
    %c768 = arith.constant 768 : index
    %136 = vector.load %arg8[%c0_59, %c768] : memref<2x1152xf32, #tpu.memory_space<vmem>>, vector<1x128xf32>
    %c1_60 = arith.constant 1 : index
    %c768_61 = arith.constant 768 : index
    %137 = vector.load %arg8[%c1_60, %c768_61] : memref<2x1152xf32, #tpu.memory_space<vmem>>, vector<1x128xf32>
    %cst_62 = arith.constant dense<0.000000e+00> : vector<128xf32>
    %138 = vector.multi_reduction <add>, %135, %cst_62 [0] : vector<8x128xf32> to vector<128xf32>
    %139 = vector.shape_cast %138 : vector<128xf32> to vector<1x128xf32>
    %cst_63 = arith.constant 1.250000e-01 : f32
    %140 = vector.broadcast %cst_63 : f32 to vector<1x128xf32>
    %141 = arith.mulf %139, %140 : vector<1x128xf32>
    %142 = arith.mulf %135, %135 : vector<8x128xf32>
    %cst_64 = arith.constant dense<0.000000e+00> : vector<128xf32>
    %143 = vector.multi_reduction <add>, %142, %cst_64 [0] : vector<8x128xf32> to vector<128xf32>
    %144 = vector.shape_cast %143 : vector<128xf32> to vector<1x128xf32>
    %cst_65 = arith.constant 1.250000e-01 : f32
    %145 = vector.broadcast %cst_65 : f32 to vector<1x128xf32>
    %146 = arith.mulf %144, %145 : vector<1x128xf32>
    %147 = arith.mulf %141, %141 : vector<1x128xf32>
    %148 = arith.subf %146, %147 : vector<1x128xf32>
    %cst_66 = arith.constant 0.000000e+00 : f32
    %149 = vector.broadcast %cst_66 : f32 to vector<1x128xf32>
    %150 = arith.maximumf %148, %149 : vector<1x128xf32>
    %cst_67 = arith.constant 9.99999974E-6 : f32
    %151 = vector.broadcast %cst_67 : f32 to vector<1x128xf32>
    %152 = arith.addf %150, %151 : vector<1x128xf32>
    %153 = math.rsqrt %152 : vector<1x128xf32>
    %154 = arith.mulf %136, %153 : vector<1x128xf32>
    %155 = arith.mulf %141, %154 : vector<1x128xf32>
    %156 = arith.subf %137, %155 : vector<1x128xf32>
    %157 = vector.broadcast %154 : vector<1x128xf32> to vector<8x128xf32>
    %158 = arith.mulf %135, %157 : vector<8x128xf32>
    %159 = vector.broadcast %156 : vector<1x128xf32> to vector<8x128xf32>
    %160 = arith.addf %158, %159 : vector<8x128xf32>
    %cst_68 = arith.constant 0.000000e+00 : f32
    %161 = vector.broadcast %cst_68 : f32 to vector<8x128xf32>
    %162 = arith.cmpf ogt, %160, %161 : vector<8x128xf32>
    %cst_69 = arith.constant 1.000000e-01 : f32
    %163 = vector.broadcast %cst_69 : f32 to vector<8x128xf32>
    %164 = arith.mulf %163, %160 : vector<8x128xf32>
    %165 = arith.select %162, %160, %164 : vector<8x128xi1>, vector<8x128xf32>
    %166 = arith.truncf %165 : vector<8x128xf32> to vector<8x128xbf16>
    %c0_70 = arith.constant 0 : index
    %c0_71 = arith.constant 0 : index
    %167 = vector.load %arg6[%c0_70, %c0_71] : memref<128x64xbf16, #tpu.memory_space<vmem>>, vector<128x64xbf16>
    %cst_72 = arith.constant dense<0.000000e+00> : vector<8x64xf32>
    %168 = tpu.matmul %166, %167, %cst_72 {dimension_numbers = #tpu.dot_dimension_numbers<[1], [0], [0], [1], [0, 0, 1, 1], [], []>} : vector<8x128xbf16>, vector<128x64xbf16>, vector<8x64xf32> -> vector<8x64xf32>
    %c0_73 = arith.constant 0 : index
    %c896 = arith.constant 896 : index
    %169 = vector.load %arg8[%c0_73, %c896] : memref<2x1152xf32, #tpu.memory_space<vmem>>, vector<1x64xf32>
    %c1_74 = arith.constant 1 : index
    %c896_75 = arith.constant 896 : index
    %170 = vector.load %arg8[%c1_74, %c896_75] : memref<2x1152xf32, #tpu.memory_space<vmem>>, vector<1x64xf32>
    %cst_76 = arith.constant dense<0.000000e+00> : vector<64xf32>
    %171 = vector.multi_reduction <add>, %168, %cst_76 [0] : vector<8x64xf32> to vector<64xf32>
    %172 = vector.shape_cast %171 : vector<64xf32> to vector<1x64xf32>
    %cst_77 = arith.constant 1.250000e-01 : f32
    %173 = vector.broadcast %cst_77 : f32 to vector<1x64xf32>
    %174 = arith.mulf %172, %173 : vector<1x64xf32>
    %175 = arith.mulf %168, %168 : vector<8x64xf32>
    %cst_78 = arith.constant dense<0.000000e+00> : vector<64xf32>
    %176 = vector.multi_reduction <add>, %175, %cst_78 [0] : vector<8x64xf32> to vector<64xf32>
    %177 = vector.shape_cast %176 : vector<64xf32> to vector<1x64xf32>
    %cst_79 = arith.constant 1.250000e-01 : f32
    %178 = vector.broadcast %cst_79 : f32 to vector<1x64xf32>
    %179 = arith.mulf %177, %178 : vector<1x64xf32>
    %180 = arith.mulf %174, %174 : vector<1x64xf32>
    %181 = arith.subf %179, %180 : vector<1x64xf32>
    %cst_80 = arith.constant 0.000000e+00 : f32
    %182 = vector.broadcast %cst_80 : f32 to vector<1x64xf32>
    %183 = arith.maximumf %181, %182 : vector<1x64xf32>
    %cst_81 = arith.constant 9.99999974E-6 : f32
    %184 = vector.broadcast %cst_81 : f32 to vector<1x64xf32>
    %185 = arith.addf %183, %184 : vector<1x64xf32>
    %186 = math.rsqrt %185 : vector<1x64xf32>
    %187 = arith.mulf %169, %186 : vector<1x64xf32>
    %188 = arith.mulf %174, %187 : vector<1x64xf32>
    %189 = arith.subf %170, %188 : vector<1x64xf32>
    %190 = vector.broadcast %187 : vector<1x64xf32> to vector<8x64xf32>
    %191 = arith.mulf %168, %190 : vector<8x64xf32>
    %192 = vector.broadcast %189 : vector<1x64xf32> to vector<8x64xf32>
    %193 = arith.addf %191, %192 : vector<8x64xf32>
    %cst_82 = arith.constant 0.000000e+00 : f32
    %194 = vector.broadcast %cst_82 : f32 to vector<8x64xf32>
    %195 = arith.cmpf ogt, %193, %194 : vector<8x64xf32>
    %cst_83 = arith.constant 1.000000e-01 : f32
    %196 = vector.broadcast %cst_83 : f32 to vector<8x64xf32>
    %197 = arith.mulf %196, %193 : vector<8x64xf32>
    %198 = arith.select %195, %193, %197 : vector<8x64xi1>, vector<8x64xf32>
    %c0_84 = arith.constant 0 : index
    %c1024 = arith.constant 1024 : index
    %199 = vector.load %arg8[%c0_84, %c1024] : memref<2x1152xf32, #tpu.memory_space<vmem>>, vector<1x4xf32>
    %c0_85 = arith.constant 0 : index
    %c0_86 = arith.constant 0 : index
    %200 = vector.load %arg7[%c0_85, %c0_86] : memref<64x4xf32, #tpu.memory_space<vmem>>, vector<64x4xf32>
    %cst_87 = arith.constant dense<0.000000e+00> : vector<8x4xf32>
    %201 = tpu.matmul %198, %200, %cst_87 {dimension_numbers = #tpu.dot_dimension_numbers<[1], [0], [0], [1], [0, 0, 1, 1], [], []>} : vector<8x64xf32>, vector<64x4xf32>, vector<8x4xf32> -> vector<8x4xf32>
    %202 = vector.broadcast %199 : vector<1x4xf32> to vector<8x4xf32>
    %203 = arith.addf %201, %202 : vector<8x4xf32>
    %c0_88 = arith.constant 0 : index
    %c0_89 = arith.constant 0 : index
    %204 = vector.load %arg9[%c0_88, %c0_89] : memref<8x4xf32, #tpu.memory_space<vmem>>, vector<8x4xf32>
    tpu.vector_store %arg9[%c0_88, %c0_89], %203 {strides = array<i32>} : memref<8x4xf32, #tpu.memory_space<vmem>>, vector<8x4xf32>,
    return
  }
}

</mosaic_0001>

<llo_original>
// kernel: tpu_custom_call.1
$region0: #{tpu_custom_call.1}
  #allocation0 [shape = 'u32[]', space=smem, size = 0x4, offset = 0x4, fixed_abs, tag = 'smem constant byte address 0x4 - core index']
  #allocation1 [shape = 'u32[72,128]{1,0:T(1,128)}', space=vmem, size = 0x9000, scoped, tag = 'internal scratch']
  %s0 = inlined_call_operand.vmem [shape: f32[8,32], index: 0, kind: input, shape index: {}]
  %s1 = inlined_call_operand.vmem [shape: bf16[32,256], index: 1, kind: input, shape index: {}]
  %s2 = inlined_call_operand.hbm [shape: bf16[256,256], index: 2, kind: input, shape index: {}]
  %s3 = inlined_call_operand.vmem [shape: bf16[256,128], index: 3, kind: input, shape index: {}]
  %s4 = inlined_call_operand.vmem [shape: bf16[128,64], index: 4, kind: input, shape index: {}]
  %s5 = inlined_call_operand.vmem [shape: bf16[64,128], index: 5, kind: input, shape index: {}]
  %s6 = inlined_call_operand.vmem [shape: bf16[128,64], index: 6, kind: input, shape index: {}]
  %s7 = inlined_call_operand.vmem [shape: f32[64,4], index: 7, kind: input, shape index: {}]
  %s8 = inlined_call_operand.vmem [shape: f32[2,1152], index: 8, kind: input, shape index: {}]
  %s9 = inlined_call_operand.vmem [shape: f32[8,4], index: 9, kind: output, shape index: {}]
  %s10 = sld [smem:[#allocation0]]
  $region50: #{tpu_custom_call.1} parent=0
    _
  %s12 = ssub.s32 1, %s10
  %s13 = scalar_select 0, %s12, %s10
  $region1: #{tpu_custom_call.1} parent=0
    #allocation2 [shape = 'u8[131072]{0}', space=vmem, size = 0x20000, scoped, tag = 'input window, operand 2, single buffered']
    #allocation3 [shape = 's32[1]{0}', space=sflag, size = 0x4, scoped, tag = 'scoped memory for tpu_custom_call.1']
    %14 = vsyncpa [#allocation3], 0
    // Predicated region
    $region2: #{tpu_custom_call.1} parent=1 // pred_check
      _
    $region3: #{tpu_custom_call.1} parent=1 // pred_check_branch
      %16 = sbr.rel (0) target = $region5
    $region4: #{tpu_custom_call.1} parent=1 // pred_region
      _
    $region5: #{tpu_custom_call.1} parent=1 // pred_fallthru
      _
    // Predicated region
    $region6: #{tpu_custom_call.1} parent=1 // pred_check
      _
    $region7: #{tpu_custom_call.1} parent=1 // pred_check_branch
      %18 = sbr.rel (0) target = $region9
    $region8: #{tpu_custom_call.1} parent=1 // pred_region
      _
    $region9: #{tpu_custom_call.1} parent=1 // pred_fallthru
      _
    // Predicated region
    $region10: #{tpu_custom_call.1} parent=1 // pred_check
      _
    $region11: #{tpu_custom_call.1} parent=1 // pred_check_branch
      %20 = sbr.rel (0) target = $region13
    $region12: #{tpu_custom_call.1} parent=1 // pred_region
      %22 = vsyncadd [#allocation3], 0
      %s23 = sshll.u32 %s2, 4
      %s24 = int_to_ptr.hbm [resolvable:$true] %s23
      %s25 = sshll.u32 [#allocation2], 4
      %s26 = int_to_ptr.vmem [resolvable:$true] %s25
      %31 = dma.hbm_to_vmem [thread:$0]  %s24, 4096, %s26, [#allocation3], 128, 128, 8
    $region13: #{tpu_custom_call.1} parent=1 // pred_fallthru
      _
    // Predicated region
    $region14: #{tpu_custom_call.1} parent=1 // pred_check
      _
    $region15: #{tpu_custom_call.1} parent=1 // pred_check_branch
      %33 = sbr.rel (0) target = $region17
    $region16: #{tpu_custom_call.1} parent=1 // pred_region
      _
    $region17: #{tpu_custom_call.1} parent=1 // pred_fallthru
      _
    // Predicated region
    $region18: #{tpu_custom_call.1} parent=1 // pred_check
      _
    $region19: #{tpu_custom_call.1} parent=1 // pred_check_branch
      %35 = sbr.rel (0) target = $region21
    $region20: #{tpu_custom_call.1} parent=1 // pred_region
      _
    $region21: #{tpu_custom_call.1} parent=1 // pred_fallthru
      _
    // Predicated region
    $region22: #{tpu_custom_call.1} parent=1 // pred_check
      _
    $region23: #{tpu_custom_call.1} parent=1 // pred_check_branch
      %37 = sbr.rel (0) target = $region25
    $region24: #{tpu_custom_call.1} parent=1 // pred_region
      _
    $region25: #{tpu_custom_call.1} parent=1 // pred_fallthru
      _
    // Predicated region
    $region26: #{tpu_custom_call.1} parent=1 // pred_check
      _
    $region27: #{tpu_custom_call.1} parent=1 // pred_check_branch
      %39 = sbr.rel (0) target = $region29
    $region28: #{tpu_custom_call.1} parent=1 // pred_region
      _
    $region29: #{tpu_custom_call.1} parent=1 // pred_fallthru
      _
    // Predicated region
    $region30: #{tpu_custom_call.1} parent=1 // pred_check
      _
    $region31: #{tpu_custom_call.1} parent=1 // pred_check_branch
      %41 = sbr.rel (0) target = $region33
    $region32: #{tpu_custom_call.1} parent=1 // pred_region
      _
    $region33: #{tpu_custom_call.1} parent=1 // pred_fallthru
      _
    // Predicated region
    $region34: #{tpu_custom_call.1} parent=1 // pred_check
      _
    $region35: #{tpu_custom_call.1} parent=1 // pred_check_branch
      %43 = sbr.rel (0) target = $region37
    $region36: #{tpu_custom_call.1} parent=1 // pred_region
      _
    $region37: #{tpu_custom_call.1} parent=1 // pred_fallthru
      _
    // Predicated region
    $region38: #{tpu_custom_call.1} parent=1 // pred_check
      _
    $region39: #{tpu_custom_call.1} parent=1 // pred_check_branch
      %45 = sbr.rel (0) target = $region41
    $region40: #{tpu_custom_call.1} parent=1 // pred_region
      %47 = dma.done [#allocation3], 4096
    $region41: #{tpu_custom_call.1} parent=1 // pred_fallthru
      _
    %v49 = vld [vmem:[%s0] sm:$0xff]
    %v50 = vpack.c.bf16 %v49, %v49
    %v51 = vld [vmem:[%s1] sm:$0xff]
    %v52 = vld [vmem:[%s1 + $0x8] sm:$0xff]
    %v53 = vld [vmem:[%s1 + $0x10] sm:$0xff]
    %v54 = vld [vmem:[%s1 + $0x18] sm:$0xff]
    %v59 = vunpack.c.l.b16 %v51
    %v60 = vunpack.c.h.b16 %v51
    %v61 = vunpack.c.l.b16 %v52
    %v62 = vunpack.c.h.b16 %v52
    %v63 = vunpack.c.l.b16 %v53
    %v64 = vunpack.c.h.b16 %v53
    %v65 = vunpack.c.l.b16 %v54
    %v66 = vunpack.c.h.b16 %v54
    %v67 = vpack.c.b16 %v61, %v59
    %v68 = vpack.c.b16 %v62, %v60
    %v69 = vpack.c.b16 %v65, %v63
    %v70 = vpack.c.b16 %v66, %v64
    %vm75 = vcmask 261120
    %v77 = vsel %vm75, %v50, 0
    %79 = vmatpush.bf16.msra.mxu0 0
    %80 = vmatpush.bf16.msra.mxu0 0
    %81 = vmatpush.bf16.msra.mxu0 0
    %82 = vmatpush.bf16.msra.mxu0 0
    %83 = vmatpush.bf16.msra.mxu0 0
    %84 = vmatpush.bf16.msra.mxu0 0
    %85 = vmatpush.bf16.msra.mxu0 %v69
    %86 = vmatpush.bf16.msra.mxu0 %v67
    %87 = vmatmul.bf16.gmra.mxu0 %v77
    %v88 = vpop.f32.mrf.mxu0
    %v89 = vadd.f32 0.0, %v88
    %v90 = vpop.f32.mrf.mxu0
    %91 = vdwg.mxu0
    %92 = vmatpush.bf16.msra.mxu0 0
    %93 = vmatpush.bf16.msra.mxu0 0
    %94 = vmatpush.bf16.msra.mxu0 0
    %95 = vmatpush.bf16.msra.mxu0 0
    %96 = vmatpush.bf16.msra.mxu0 0
    %97 = vmatpush.bf16.msra.mxu0 0
    %98 = vmatpush.bf16.msra.mxu0 %v70
    %99 = vmatpush.bf16.msra.mxu0 %v68
    %100 = vmatmul.bf16.gmra.mxu0 %v77
    %v101 = vpop.f32.mrf.mxu0
    %v102 = vadd.f32 0.0, %v101
    %v103 = vpop.f32.mrf.mxu0
    %104 = vdwg.mxu0
    %v105 = vld [vmem:[%s8] ss:$2 sm:$0x3]
    %s106 = scalar_lea.vmem %s8, 1
    %v107 = vld [vmem:[%s106] ss:$2 sm:$0x3]
    %v108 = vrot.slane %v89, 4
    %v109 = vadd.f32 %v89, %v108
    %v110 = vrot.slane %v109, 2
    %v111 = vadd.f32 %v109, %v110
    %v112 = vrot.slane %v111, 1
    %v113 = vadd.f32 %v111, %v112
    %v114 = vrot.slane %v102, 4
    %v115 = vadd.f32 %v102, %v114
    %v116 = vrot.slane %v115, 2
    %v117 = vadd.f32 %v115, %v116
    %v118 = vrot.slane %v117, 1
    %v119 = vadd.f32 %v117, %v118
    %v120 = vmul.f32 %v113, 0.125
    %v121 = vmul.f32 %v119, 0.125
    %v122 = vmul.f32 %v89, %v89
    %v123 = vmul.f32 %v102, %v102
    %v124 = vrot.slane %v122, 4
    %v125 = vadd.f32 %v122, %v124
    %v126 = vrot.slane %v125, 2
    %v127 = vadd.f32 %v125, %v126
    %v128 = vrot.slane %v127, 1
    %v129 = vadd.f32 %v127, %v128
    %v130 = vrot.slane %v123, 4
    %v131 = vadd.f32 %v123, %v130
    %v132 = vrot.slane %v131, 2
    %v133 = vadd.f32 %v131, %v132
    %v134 = vrot.slane %v133, 1
    %v135 = vadd.f32 %v133, %v134
    %v136 = vmul.f32 %v129, 0.125
    %v137 = vmul.f32 %v135, 0.125
    %v138 = vmul.f32 %v120, %v120
    %v139 = vmul.f32 %v121, %v121
    %v140 = vsub.f32 %v136, %v138
    %v141 = vsub.f32 %v137, %v139
    %v142 = vmax.f32 %v140, 0.0
    %v143 = vmax.f32 %v141, 0.0
    %v144 = vadd.f32 %v142, 1e-05
    %v145 = vadd.f32 %v143, 1e-05
    %v146 = vrsqrt.pop %v144
    %v147 = vmul.f32 %v146, %v144
    %v148 = vmul.f32 %v147, %v146
    %v149 = vmul.f32 0.5, %v148
    %v150 = vsub.f32 1.5, %v149
    %v151 = vmul.f32 %v146, %v150
    %vm152 = vweird.f32 %v144
    %vm153 = vweird.f32 %v146
    %vm154 = vmor %vm152, %vm153
    %v155 = vsel %vm154, %v146, %v151
    %v156 = vrsqrt.pop %v145
    %v157 = vmul.f32 %v156, %v145
    %v158 = vmul.f32 %v157, %v156
    %v159 = vmul.f32 0.5, %v158
    %v160 = vsub.f32 1.5, %v159
    %v161 = vmul.f32 %v156, %v160
    %vm162 = vweird.f32 %v145
    %vm163 = vweird.f32 %v156
    %vm164 = vmor %vm162, %vm163
    %v165 = vsel %vm164, %v156, %v161
    %v168 = vrot.slane %v165, 7
    %vm169 = vcmask 1040384
    %v170 = vsel %vm169, %v155, %v168
    %v172 = vmul.f32 %v105, %v170
    %v174 = vperm.slane %v172, 0
    %v175 = vperm.slane %v172, 1
    %v178 = vmul.f32 %v120, %v174
    %v179 = vmul.f32 %v121, %v175
    %v182 = vrot.slane %v179, 7
    %v183 = vsel %vm169, %v178, %v182
    %v185 = vsub.f32 %v107, %v183
    %v186 = vmul.f32 %v89, %v174
    %v187 = vmul.f32 %v102, %v175
    %v189 = vperm.slane %v185, 0
    %v190 = vperm.slane %v185, 1
    %v193 = vadd.f32 %v186, %v189
    %v194 = vadd.f32 %v187, %v190
    %vm195 = vcmp.gt.f32.partialorder %v193, 0.0
    %vm196 = vcmp.gt.f32.partialorder %v194, 0.0
    %v197 = vmul.f32 %v193, 0.1
    %v198 = vmul.f32 %v194, 0.1
    %v199 = vsel %vm195, %v193, %v197
    %v200 = vsel %vm196, %v194, %v198
    %v201 = vpack.c.bf16 %v199, %v199
    %v202 = vpack.c.bf16 %v200, %v200
    %v203 = vld [vmem:[#allocation2] sm:$0xff]
    %v204 = vld [vmem:[#allocation2 + $0x8] sm:$0xff]
    %v205 = vld [vmem:[#allocation2 + $0x10] sm:$0xff]
    %v206 = vld [vmem:[#allocation2 + $0x18] sm:$0xff]
    %v207 = vld [vmem:[#allocation2 + $0x20] sm:$0xff]
    %v208 = vld [vmem:[#allocation2 + $0x28] sm:$0xff]
    %v209 = vld [vmem:[#allocation2 + $0x30] sm:$0xff]
    %v210 = vld [vmem:[#allocation2 + $0x38] sm:$0xff]
    %v211 = vld [vmem:[#allocation2 + $0x40] sm:$0xff]
    %v212 = vld [vmem:[#allocation2 + $0x48] sm:$0xff]
    %v213 = vld [vmem:[#allocation2 + $0x50] sm:$0xff]
    %v214 = vld [vmem:[#allocation2 + $0x58] sm:$0xff]
    %v215 = vld [vmem:[#allocation2 + $0x60] sm:$0xff]
    %v216 = vld [vmem:[#allocation2 + $0x68] sm:$0xff]
    %v217 = vld [vmem:[#allocation2 + $0x70] sm:$0xff]
    %v218 = vld [vmem:[#allocation2 + $0x78] sm:$0xff]
    %v219 = vld [vmem:[#allocation2 + $0x80] sm:$0xff]
    %v220 = vld [vmem:[#allocation2 + $0x88] sm:$0xff]
    %v221 = vld [vmem:[#allocation2 + $0x90] sm:$0xff]
    %v222 = vld [vmem:[#allocation2 + $0x98] sm:$0xff]
    %v223 = vld [vmem:[#allocation2 + $0xa0] sm:$0xff]
    %v224 = vld [vmem:[#allocation2 + $0xa8] sm:$0xff]
    %v225 = vld [vmem:[#allocation2 + $0xb0] sm:$0xff]
    %v226 = vld [vmem:[#allocation2 + $0xb8] sm:$0xff]
    %v227 = vld [vmem:[#allocation2 + $0xc0] sm:$0xff]
    %v228 = vld [vmem:[#allocation2 + $0xc8] sm:$0xff]
    %v229 = vld [vmem:[#allocation2 + $0xd0] sm:$0xff]
    %v230 = vld [vmem:[#allocation2 + $0xd8] sm:$0xff]
    %v231 = vld [vmem:[#allocation2 + $0xe0] sm:$0xff]
    %v232 = vld [vmem:[#allocation2 + $0xe8] sm:$0xff]
    %v233 = vld [vmem:[#allocation2 + $0xf0] sm:$0xff]
    %v234 = vld [vmem:[#allocation2 + $0xf8] sm:$0xff]
    %v267 = vunpack.c.l.b16 %v203
    %v268 = vunpack.c.h.b16 %v203
    %v269 = vunpack.c.l.b16 %v204
    %v270 = vunpack.c.h.b16 %v204
    %v271 = vunpack.c.l.b16 %v205
    %v272 = vunpack.c.h.b16 %v205
    %v273 = vunpack.c.l.b16 %v206
    %v274 = vunpack.c.h.b16 %v206
    %v275 = vunpack.c.l.b16 %v207
    %v276 = vunpack.c.h.b16 %v207
    %v277 = vunpack.c.l.b16 %v208
    %v278 = vunpack.c.h.b16 %v208
    %v279 = vunpack.c.l.b16 %v209
    %v280 = vunpack.c.h.b16 %v209
    %v281 = vunpack.c.l.b16 %v210
    %v282 = vunpack.c.h.b16 %v210
    %v283 = vunpack.c.l.b16 %v211
    %v284 = vunpack.c.h.b16 %v211
    %v285 = vunpack.c.l.b16 %v212
    %v286 = vunpack.c.h.b16 %v212
    %v287 = vunpack.c.l.b16 %v213
    %v288 = vunpack.c.h.b16 %v213
    %v289 = vunpack.c.l.b16 %v214
    %v290 = vunpack.c.h.b16 %v214
    %v291 = vunpack.c.l.b16 %v215
    %v292 = vunpack.c.h.b16 %v215
    %v293 = vunpack.c.l.b16 %v216
    %v294 = vunpack.c.h.b16 %v216
    %v295 = vunpack.c.l.b16 %v217
    %v296 = vunpack.c.h.b16 %v217
    %v297 = vunpack.c.l.b16 %v218
    %v298 = vunpack.c.h.b16 %v218
    %v299 = vunpack.c.l.b16 %v219
    %v300 = vunpack.c.h.b16 %v219
    %v301 = vunpack.c.l.b16 %v220
    %v302 = vunpack.c.h.b16 %v220
    %v303 = vunpack.c.l.b16 %v221
    %v304 = vunpack.c.h.b16 %v221
    %v305 = vunpack.c.l.b16 %v222
    %v306 = vunpack.c.h.b16 %v222
    %v307 = vunpack.c.l.b16 %v223
    %v308 = vunpack.c.h.b16 %v223
    %v309 = vunpack.c.l.b16 %v224
    %v310 = vunpack.c.h.b16 %v224
    %v311 = vunpack.c.l.b16 %v225
    %v312 = vunpack.c.h.b16 %v225
    %v313 = vunpack.c.l.b16 %v226
    %v314 = vunpack.c.h.b16 %v226
    %v315 = vunpack.c.l.b16 %v227
    %v316 = vunpack.c.h.b16 %v227
    %v317 = vunpack.c.l.b16 %v228
    %v318 = vunpack.c.h.b16 %v228
    %v319 = vunpack.c.l.b16 %v229
    %v320 = vunpack.c.h.b16 %v229
    %v321 = vunpack.c.l.b16 %v230
    %v322 = vunpack.c.h.b16 %v230
    %v323 = vunpack.c.l.b16 %v231
    %v324 = vunpack.c.h.b16 %v231
    %v325 = vunpack.c.l.b16 %v232
    %v326 = vunpack.c.h.b16 %v232
    %v327 = vunpack.c.l.b16 %v233
    %v328 = vunpack.c.h.b16 %v233
    %v329 = vunpack.c.l.b16 %v234
    %v330 = vunpack.c.h.b16 %v234
    %v331 = vpack.c.b16 %v269, %v267
    %v332 = vpack.c.b16 %v270, %v268
    %v333 = vpack.c.b16 %v273, %v271
    %v334 = vpack.c.b16 %v274, %v272
    %v335 = vpack.c.b16 %v277, %v275
    %v336 = vpack.c.b16 %v278, %v276
    %v337 = vpack.c.b16 %v281, %v279
    %v338 = vpack.c.b16 %v282, %v280
    %v339 = vpack.c.b16 %v285, %v283
    %v340 = vpack.c.b16 %v286, %v284
    %v341 = vpack.c.b16 %v289, %v287
    %v342 = vpack.c.b16 %v290, %v288
    %v343 = vpack.c.b16 %v293, %v291
    %v344 = vpack.c.b16 %v294, %v292
    %v345 = vpack.c.b16 %v297, %v295
    %v346 = vpack.c.b16 %v298, %v296
    %v347 = vpack.c.b16 %v301, %v299
    %v348 = vpack.c.b16 %v302, %v300
    %v349 = vpack.c.b16 %v305, %v303
    %v350 = vpack.c.b16 %v306, %v304
    %v351 = vpack.c.b16 %v309, %v307
    %v352 = vpack.c.b16 %v310, %v308
    %v353 = vpack.c.b16 %v313, %v311
    %v354 = vpack.c.b16 %v314, %v312
    %v355 = vpack.c.b16 %v317, %v315
    %v356 = vpack.c.b16 %v318, %v316
    %v357 = vpack.c.b16 %v321, %v319
    %v358 = vpack.c.b16 %v322, %v320
    %v359 = vpack.c.b16 %v325, %v323
    %v360 = vpack.c.b16 %v326, %v324
    %v361 = vpack.c.b16 %v329, %v327
    %v362 = vpack.c.b16 %v330, %v328
    %395 = vmatpush.bf16.msra.mxu0 %v345
    %396 = vmatpush.bf16.msra.mxu0 %v343
    %397 = vmatpush.bf16.msra.mxu0 %v341
    %398 = vmatpush.bf16.msra.mxu0 %v339
    %399 = vmatpush.bf16.msra.mxu0 %v337
    %400 = vmatpush.bf16.msra.mxu0 %v335
    %401 = vmatpush.bf16.msra.mxu0 %v333
    %402 = vmatpush.bf16.msra.mxu0 %v331
    %403 = vmatmul.bf16.gmra.mxu0 %v201
    %v404 = vpop.f32.mrf.mxu0
    %v405 = vadd.f32 0.0, %v404
    %v406 = vpop.f32.mrf.mxu0
    %407 = vdwg.mxu0
    %408 = vmatpush.bf16.msra.mxu0 %v361
    %409 = vmatpush.bf16.msra.mxu0 %v359
    %410 = vmatpush.bf16.msra.mxu0 %v357
    %411 = vmatpush.bf16.msra.mxu0 %v355
    %412 = vmatpush.bf16.msra.mxu0 %v353
    %413 = vmatpush.bf16.msra.mxu0 %v351
    %414 = vmatpush.bf16.msra.mxu0 %v349
    %415 = vmatpush.bf16.msra.mxu0 %v347
    %416 = vmatmul.bf16.gmra.mxu0 %v202
    %v417 = vpop.f32.mrf.mxu0
    %v418 = vadd.f32 %v405, %v417
    %v419 = vpop.f32.mrf.mxu0
    %420 = vdwg.mxu0
    %421 = vmatpush.bf16.msra.mxu0 %v346
    %422 = vmatpush.bf16.msra.mxu0 %v344
    %423 = vmatpush.bf16.msra.mxu0 %v342
    %424 = vmatpush.bf16.msra.mxu0 %v340
    %425 = vmatpush.bf16.msra.mxu0 %v338
    %426 = vmatpush.bf16.msra.mxu0 %v336
    %427 = vmatpush.bf16.msra.mxu0 %v334
    %428 = vmatpush.bf16.msra.mxu0 %v332
    %429 = vmatmul.bf16.gmra.mxu0 %v201
    %v430 = vpop.f32.mrf.mxu0
    %v431 = vadd.f32 0.0, %v430
    %v432 = vpop.f32.mrf.mxu0
    %433 = vdwg.mxu0
    %434 = vmatpush.bf16.msra.mxu0 %v362
    %435 = vmatpush.bf16.msra.mxu0 %v360
    %436 = vmatpush.bf16.msra.mxu0 %v358
    %437 = vmatpush.bf16.msra.mxu0 %v356
    %438 = vmatpush.bf16.msra.mxu0 %v354
    %439 = vmatpush.bf16.msra.mxu0 %v352
    %440 = vmatpush.bf16.msra.mxu0 %v350
    %441 = vmatpush.bf16.msra.mxu0 %v348
    %442 = vmatmul.bf16.gmra.mxu0 %v202
    %v443 = vpop.f32.mrf.mxu0
    %v444 = vadd.f32 %v431, %v443
    %v445 = vpop.f32.mrf.mxu0
    %446 = vdwg.mxu0
    %s447 = scalar_lea.vmem %s8, 4
    %v448 = vld [vmem:[%s447] ss:$2 sm:$0x3]
    %s449 = scalar_lea.vmem %s8, 5
    %v450 = vld [vmem:[%s449] ss:$2 sm:$0x3]
    %v451 = vrot.slane %v418, 4
    %v452 = vadd.f32 %v418, %v451
    %v453 = vrot.slane %v452, 2
    %v454 = vadd.f32 %v452, %v453
    %v455 = vrot.slane %v454, 1
    %v456 = vadd.f32 %v454, %v455
    %v457 = vrot.slane %v444, 4
    %v458 = vadd.f32 %v444, %v457
    %v459 = vrot.slane %v458, 2
    %v460 = vadd.f32 %v458, %v459
    %v461 = vrot.slane %v460, 1
    %v462 = vadd.f32 %v460, %v461
    %v463 = vmul.f32 %v456, 0.125
    %v464 = vmul.f32 %v462, 0.125
    %v465 = vmul.f32 %v418, %v418
    %v466 = vmul.f32 %v444, %v444
    %v467 = vrot.slane %v465, 4
    %v468 = vadd.f32 %v465, %v467
    %v469 = vrot.slane %v468, 2
    %v470 = vadd.f32 %v468, %v469
    %v471 = vrot.slane %v470, 1
    %v472 = vadd.f32 %v470, %v471
    %v473 = vrot.slane %v466, 4
    %v474 = vadd.f32 %v466, %v473
    %v475 = vrot.slane %v474, 2
    %v476 = vadd.f32 %v474, %v475
    %v477 = vrot.slane %v476, 1
    %v478 = vadd.f32 %v476, %v477
    %v479 = vmul.f32 %v472, 0.125
    %v480 = vmul.f32 %v478, 0.125
    %v481 = vmul.f32 %v463, %v463
    %v482 = vmul.f32 %v464, %v464
    %v483 = vsub.f32 %v479, %v481
    %v484 = vsub.f32 %v480, %v482
    %v485 = vmax.f32 %v483, 0.0
    %v486 = vmax.f32 %v484, 0.0
    %v487 = vadd.f32 %v485, 1e-05
    %v488 = vadd.f32 %v486, 1e-05
    %v489 = vrsqrt.pop %v487
    %v490 = vmul.f32 %v489, %v487
    %v491 = vmul.f32 %v490, %v489
    %v492 = vmul.f32 0.5, %v491
    %v493 = vsub.f32 1.5, %v492
    %v494 = vmul.f32 %v489, %v493
    %vm495 = vweird.f32 %v487
    %vm496 = vweird.f32 %v489
    %vm497 = vmor %vm495, %vm496
    %v498 = vsel %vm497, %v489, %v494
    %v499 = vrsqrt.pop %v488
    %v500 = vmul.f32 %v499, %v488
    %v501 = vmul.f32 %v500, %v499
    %v502 = vmul.f32 0.5, %v501
    %v503 = vsub.f32 1.5, %v502
    %v504 = vmul.f32 %v499, %v503
    %vm505 = vweird.f32 %v488
    %vm506 = vweird.f32 %v499
    %vm507 = vmor %vm505, %vm506
    %v508 = vsel %vm507, %v499, %v504
    %v511 = vrot.slane %v508, 7
    %v512 = vsel %vm169, %v498, %v511
    %v514 = vmul.f32 %v448, %v512
    %v516 = vperm.slane %v514, 0
    %v517 = vperm.slane %v514, 1
    %v520 = vmul.f32 %v463, %v516
    %v521 = vmul.f32 %v464, %v517
    %v524 = vrot.slane %v521, 7
    %v525 = vsel %vm169, %v520, %v524
    %v527 = vsub.f32 %v450, %v525
    %v528 = vmul.f32 %v418, %v516
    %v529 = vmul.f32 %v444, %v517
    %v531 = vperm.slane %v527, 0
    %v532 = vperm.slane %v527, 1
    %v535 = vadd.f32 %v528, %v531
    %v536 = vadd.f32 %v529, %v532
    %vm537 = vcmp.gt.f32.partialorder %v535, 0.0
    %vm538 = vcmp.gt.f32.partialorder %v536, 0.0
    %v539 = vmul.f32 %v535, 0.1
    %v540 = vmul.f32 %v536, 0.1
    %v541 = vsel %vm537, %v535, %v539
    %v542 = vsel %vm538, %v536, %v540
    %v543 = vpack.c.bf16 %v541, %v541
    %v544 = vpack.c.bf16 %v542, %v542
    %v545 = vld [vmem:[%s3] sm:$0xf]
    %v546 = vld [vmem:[%s3 + $0x4] sm:$0xf]
    %v547 = vld [vmem:[%s3 + $0x8] sm:$0xf]
    %v548 = vld [vmem:[%s3 + $0xc] sm:$0xf]
    %v549 = vld [vmem:[%s3 + $0x10] sm:$0xf]
    %v550 = vld [vmem:[%s3 + $0x14] sm:$0xf]
    %v551 = vld [vmem:[%s3 + $0x18] sm:$0xf]
    %v552 = vld [vmem:[%s3 + $0x1c] sm:$0xf]
    %v553 = vld [vmem:[%s3 + $0x20] sm:$0xf]
    %v554 = vld [vmem:[%s3 + $0x24] sm:$0xf]
    %v555 = vld [vmem:[%s3 + $0x28] sm:$0xf]
    %v556 = vld [vmem:[%s3 + $0x2c] sm:$0xf]
    %v557 = vld [vmem:[%s3 + $0x30] sm:$0xf]
    %v558 = vld [vmem:[%s3 + $0x34] sm:$0xf]
    %v559 = vld [vmem:[%s3 + $0x38] sm:$0xf]
    %v560 = vld [vmem:[%s3 + $0x3c] sm:$0xf]
    %v561 = vld [vmem:[%s3 + $0x40] sm:$0xf]
    %v562 = vld [vmem:[%s3 + $0x44] sm:$0xf]
    %v563 = vld [vmem:[%s3 + $0x48] sm:$0xf]
    %v564 = vld [vmem:[%s3 + $0x4c] sm:$0xf]
    %v565 = vld [vmem:[%s3 + $0x50] sm:$0xf]
    %v566 = vld [vmem:[%s3 + $0x54] sm:$0xf]
    %v567 = vld [vmem:[%s3 + $0x58] sm:$0xf]
    %v568 = vld [vmem:[%s3 + $0x5c] sm:$0xf]
    %v569 = vld [vmem:[%s3 + $0x60] sm:$0xf]
    %v570 = vld [vmem:[%s3 + $0x64] sm:$0xf]
    %v571 = vld [vmem:[%s3 + $0x68] sm:$0xf]
    %v572 = vld [vmem:[%s3 + $0x6c] sm:$0xf]
    %v573 = vld [vmem:[%s3 + $0x70] sm:$0xf]
    %v574 = vld [vmem:[%s3 + $0x74] sm:$0xf]
    %v575 = vld [vmem:[%s3 + $0x78] sm:$0xf]
    %v576 = vld [vmem:[%s3 + $0x7c] sm:$0xf]
    %v609 = vunpack.c.l.b16 %v545
    %v610 = vunpack.c.l.b16 %v546
    %v611 = vunpack.c.l.b16 %v547
    %v612 = vunpack.c.l.b16 %v548
    %v613 = vunpack.c.l.b16 %v549
    %v614 = vunpack.c.l.b16 %v550
    %v615 = vunpack.c.l.b16 %v551
    %v616 = vunpack.c.l.b16 %v552
    %v617 = vunpack.c.l.b16 %v553
    %v618 = vunpack.c.l.b16 %v554
    %v619 = vunpack.c.l.b16 %v555
    %v620 = vunpack.c.l.b16 %v556
    %v621 = vunpack.c.l.b16 %v557
    %v622 = vunpack.c.l.b16 %v558
    %v623 = vunpack.c.l.b16 %v559
    %v624 = vunpack.c.l.b16 %v560
    %v625 = vunpack.c.l.b16 %v561
    %v626 = vunpack.c.l.b16 %v562
    %v627 = vunpack.c.l.b16 %v563
    %v628 = vunpack.c.l.b16 %v564
    %v629 = vunpack.c.l.b16 %v565
    %v630 = vunpack.c.l.b16 %v566
    %v631 = vunpack.c.l.b16 %v567
    %v632 = vunpack.c.l.b16 %v568
    %v633 = vunpack.c.l.b16 %v569
    %v634 = vunpack.c.l.b16 %v570
    %v635 = vunpack.c.l.b16 %v571
    %v636 = vunpack.c.l.b16 %v572
    %v637 = vunpack.c.l.b16 %v573
    %v638 = vunpack.c.l.b16 %v574
    %v639 = vunpack.c.l.b16 %v575
    %v640 = vunpack.c.l.b16 %v576
    %v641 = vpack.c.b16 %v610, %v609
    %v642 = vpack.c.b16 %v612, %v611
    %v643 = vpack.c.b16 %v614, %v613
    %v644 = vpack.c.b16 %v616, %v615
    %v645 = vpack.c.b16 %v618, %v617
    %v646 = vpack.c.b16 %v620, %v619
    %v647 = vpack.c.b16 %v622, %v621
    %v648 = vpack.c.b16 %v624, %v623
    %v649 = vpack.c.b16 %v626, %v625
    %v650 = vpack.c.b16 %v628, %v627
    %v651 = vpack.c.b16 %v630, %v629
    %v652 = vpack.c.b16 %v632, %v631
    %v653 = vpack.c.b16 %v634, %v633
    %v654 = vpack.c.b16 %v636, %v635
    %v655 = vpack.c.b16 %v638, %v637
    %v656 = vpack.c.b16 %v640, %v639
    %673 = vmatpush.bf16.msra.mxu0 %v648
    %674 = vmatpush.bf16.msra.mxu0 %v647
    %675 = vmatpush.bf16.msra.mxu0 %v646
    %676 = vmatpush.bf16.msra.mxu0 %v645
    %677 = vmatpush.bf16.msra.mxu0 %v644
    %678 = vmatpush.bf16.msra.mxu0 %v643
    %679 = vmatpush.bf16.msra.mxu0 %v642
    %680 = vmatpush.bf16.msra.mxu0 %v641
    %681 = vmatmul.bf16.gmra.mxu0 %v543
    %v682 = vpop.f32.mrf.mxu0
    %v683 = vadd.f32 0.0, %v682
    %v684 = vpop.f32.mrf.mxu0
    %685 = vdwg.mxu0
    %686 = vmatpush.bf16.msra.mxu0 %v656
    %687 = vmatpush.bf16.msra.mxu0 %v655
    %688 = vmatpush.bf16.msra.mxu0 %v654
    %689 = vmatpush.bf16.msra.mxu0 %v653
    %690 = vmatpush.bf16.msra.mxu0 %v652
    %691 = vmatpush.bf16.msra.mxu0 %v651
    %692 = vmatpush.bf16.msra.mxu0 %v650
    %693 = vmatpush.bf16.msra.mxu0 %v649
    %694 = vmatmul.bf16.gmra.mxu0 %v544
    %v695 = vpop.f32.mrf.mxu0
    %v696 = vadd.f32 %v683, %v695
    %v697 = vpop.f32.mrf.mxu0
    %698 = vdwg.mxu0
    %v699 = vld [vmem:[%s8 + $0x8] sm:$0x1]
    %v700 = vld [vmem:[%s8 + $0x9] sm:$0x1]
    %v701 = vrot.slane %v696, 4
    %v702 = vadd.f32 %v696, %v701
    %v703 = vrot.slane %v702, 2
    %v704 = vadd.f32 %v702, %v703
    %v705 = vrot.slane %v704, 1
    %v706 = vadd.f32 %v704, %v705
    %v707 = vmul.f32 %v706, 0.125
    %v708 = vmul.f32 %v696, %v696
    %v709 = vrot.slane %v708, 4
    %v710 = vadd.f32 %v708, %v709
    %v711 = vrot.slane %v710, 2
    %v712 = vadd.f32 %v710, %v711
    %v713 = vrot.slane %v712, 1
    %v714 = vadd.f32 %v712, %v713
    %v715 = vmul.f32 %v714, 0.125
    %v716 = vmul.f32 %v707, %v707
    %v717 = vsub.f32 %v715, %v716
    %v718 = vmax.f32 %v717, 0.0
    %v719 = vadd.f32 %v718, 1e-05
    %v720 = vrsqrt.pop %v719
    %v721 = vmul.f32 %v720, %v719
    %v722 = vmul.f32 %v721, %v720
    %v723 = vmul.f32 0.5, %v722
    %v724 = vsub.f32 1.5, %v723
    %v725 = vmul.f32 %v720, %v724
    %vm726 = vweird.f32 %v719
    %vm727 = vweird.f32 %v720
    %vm728 = vmor %vm726, %vm727
    %v729 = vsel %vm728, %v720, %v725
    %v730 = vmul.f32 %v699, %v729
    %v731 = vmul.f32 %v707, %v730
    %v732 = vsub.f32 %v700, %v731
    %v733 = vperm.slane %v730, 0
    %v734 = vmul.f32 %v696, %v733
    %v735 = vperm.slane %v732, 0
    %v736 = vadd.f32 %v734, %v735
    %vm737 = vcmp.gt.f32.partialorder %v736, 0.0
    %v738 = vmul.f32 %v736, 0.1
    %v739 = vsel %vm737, %v736, %v738
    %v740 = vpack.c.bf16 %v739, %v739
    %v741 = vld [vmem:[%s4] sm:$0xf]
    %v742 = vld [vmem:[%s4 + $0x4] sm:$0xf]
    %v743 = vld [vmem:[%s4 + $0x8] sm:$0xf]
    %v744 = vld [vmem:[%s4 + $0xc] sm:$0xf]
    %v745 = vld [vmem:[%s4 + $0x10] sm:$0xf]
    %v746 = vld [vmem:[%s4 + $0x14] sm:$0xf]
    %v747 = vld [vmem:[%s4 + $0x18] sm:$0xf]
    %v748 = vld [vmem:[%s4 + $0x1c] sm:$0xf]
    %v749 = vld [vmem:[%s4 + $0x20] sm:$0xf]
    %v750 = vld [vmem:[%s4 + $0x24] sm:$0xf]
    %v751 = vld [vmem:[%s4 + $0x28] sm:$0xf]
    %v752 = vld [vmem:[%s4 + $0x2c] sm:$0xf]
    %v753 = vld [vmem:[%s4 + $0x30] sm:$0xf]
    %v754 = vld [vmem:[%s4 + $0x34] sm:$0xf]
    %v755 = vld [vmem:[%s4 + $0x38] sm:$0xf]
    %v756 = vld [vmem:[%s4 + $0x3c] sm:$0xf]
    %v773 = vunpack.c.l.b16 %v741
    %v774 = vunpack.c.l.b16 %v742
    %v775 = vunpack.c.l.b16 %v743
    %v776 = vunpack.c.l.b16 %v744
    %v777 = vunpack.c.l.b16 %v745
    %v778 = vunpack.c.l.b16 %v746
    %v779 = vunpack.c.l.b16 %v747
    %v780 = vunpack.c.l.b16 %v748
    %v781 = vunpack.c.l.b16 %v749
    %v782 = vunpack.c.l.b16 %v750
    %v783 = vunpack.c.l.b16 %v751
    %v784 = vunpack.c.l.b16 %v752
    %v785 = vunpack.c.l.b16 %v753
    %v786 = vunpack.c.l.b16 %v754
    %v787 = vunpack.c.l.b16 %v755
    %v788 = vunpack.c.l.b16 %v756
    %v789 = vpack.c.b16 %v774, %v773
    %v790 = vpack.c.b16 %v776, %v775
    %v791 = vpack.c.b16 %v778, %v777
    %v792 = vpack.c.b16 %v780, %v779
    %v793 = vpack.c.b16 %v782, %v781
    %v794 = vpack.c.b16 %v784, %v783
    %v795 = vpack.c.b16 %v786, %v785
    %v796 = vpack.c.b16 %v788, %v787
    %805 = vmatpush.bf16.msra.mxu0 %v796
    %806 = vmatpush.bf16.msra.mxu0 %v795
    %807 = vmatpush.bf16.msra.mxu0 %v794
    %808 = vmatpush.bf16.msra.mxu0 %v793
    %809 = vmatpush.bf16.msra.mxu0 %v792
    %810 = vmatpush.bf16.msra.mxu0 %v791
    %811 = vmatpush.bf16.msra.mxu0 %v790
    %812 = vmatpush.bf16.msra.mxu0 %v789
    %813 = vmatmul.bf16.gmra.mxu0 %v740
    %v814 = vpop.f32.mrf.mxu0
    %v815 = vadd.f32 0.0, %v814
    %v816 = vpop.f32.mrf.mxu0
    %817 = vdwg.mxu0
    %v818 = vld [vmem:[%s8 + $0xa] sm:$0x1]
    %v819 = vld [vmem:[%s8 + $0xb] sm:$0x1]
    %vm820 = vcmask 523264
    %v821 = vsel %vm820, %v815, 0.0
    %v822 = vrot.slane %v821, 4
    %v823 = vadd.f32 %v821, %v822
    %v824 = vrot.slane %v823, 2
    %v825 = vadd.f32 %v823, %v824
    %v826 = vrot.slane %v825, 1
    %v827 = vadd.f32 %v825, %v826
    %v828 = vmul.f32 %v827, 0.125
    %v829 = vmul.f32 %v815, %v815
    %v830 = vsel %vm820, %v829, 0.0
    %v831 = vrot.slane %v830, 4
    %v832 = vadd.f32 %v830, %v831
    %v833 = vrot.slane %v832, 2
    %v834 = vadd.f32 %v832, %v833
    %v835 = vrot.slane %v834, 1
    %v836 = vadd.f32 %v834, %v835
    %v837 = vmul.f32 %v836, 0.125
    %v838 = vmul.f32 %v828, %v828
    %v839 = vsub.f32 %v837, %v838
    %v840 = vmax.f32 %v839, 0.0
    %v841 = vadd.f32 %v840, 1e-05
    %v842 = vrsqrt.pop %v841
    %v843 = vmul.f32 %v842, %v841
    %v844 = vmul.f32 %v843, %v842
    %v845 = vmul.f32 0.5, %v844
    %v846 = vsub.f32 1.5, %v845
    %v847 = vmul.f32 %v842, %v846
    %vm848 = vweird.f32 %v841
    %vm849 = vweird.f32 %v842
    %vm850 = vmor %vm848, %vm849
    %v851 = vsel %vm850, %v842, %v847
    %v852 = vmul.f32 %v818, %v851
    %v853 = vmul.f32 %v828, %v852
    %v854 = vsub.f32 %v819, %v853
    %v855 = vperm.slane %v852, 0
    %v856 = vmul.f32 %v815, %v855
    %v857 = vperm.slane %v854, 0
    %v858 = vadd.f32 %v856, %v857
    %vm859 = vcmp.gt.f32.partialorder %v858, 0.0
    %v860 = vmul.f32 %v858, 0.1
    %v861 = vsel %vm859, %v858, %v860
    %v862 = vpack.c.bf16 %v861, %v861
    %v863 = vld [vmem:[%s5] sm:$0xf]
    %v864 = vld [vmem:[%s5 + $0x4] sm:$0xf]
    %v865 = vld [vmem:[%s5 + $0x8] sm:$0xf]
    %v866 = vld [vmem:[%s5 + $0xc] sm:$0xf]
    %v867 = vld [vmem:[%s5 + $0x10] sm:$0xf]
    %v868 = vld [vmem:[%s5 + $0x14] sm:$0xf]
    %v869 = vld [vmem:[%s5 + $0x18] sm:$0xf]
    %v870 = vld [vmem:[%s5 + $0x1c] sm:$0xf]
    %v879 = vunpack.c.l.b16 %v863
    %v880 = vunpack.c.l.b16 %v864
    %v881 = vunpack.c.l.b16 %v865
    %v882 = vunpack.c.l.b16 %v866
    %v883 = vunpack.c.l.b16 %v867
    %v884 = vunpack.c.l.b16 %v868
    %v885 = vunpack.c.l.b16 %v869
    %v886 = vunpack.c.l.b16 %v870
    %v887 = vpack.c.b16 %v880, %v879
    %v888 = vpack.c.b16 %v882, %v881
    %v889 = vpack.c.b16 %v884, %v883
    %v890 = vpack.c.b16 %v886, %v885
    %v896 = vsel %vm820, %v862, 0
    %898 = vmatpush.bf16.msra.mxu0 0
    %899 = vmatpush.bf16.msra.mxu0 0
    %900 = vmatpush.bf16.msra.mxu0 0
    %901 = vmatpush.bf16.msra.mxu0 0
    %902 = vmatpush.bf16.msra.mxu0 %v890
    %903 = vmatpush.bf16.msra.mxu0 %v889
    %904 = vmatpush.bf16.msra.mxu0 %v888
    %905 = vmatpush.bf16.msra.mxu0 %v887
    %906 = vmatmul.bf16.gmra.mxu0 %v896
    %v907 = vpop.f32.mrf.mxu0
    %v908 = vadd.f32 0.0, %v907
    %v909 = vpop.f32.mrf.mxu0
    %910 = vdwg.mxu0
    %v911 = vld [vmem:[%s8 + $0xc] sm:$0x1]
    %v912 = vld [vmem:[%s8 + $0xd] sm:$0x1]
    %v913 = vrot.slane %v908, 4
    %v914 = vadd.f32 %v908, %v913
    %v915 = vrot.slane %v914, 2
    %v916 = vadd.f32 %v914, %v915
    %v917 = vrot.slane %v916, 1
    %v918 = vadd.f32 %v916, %v917
    %v919 = vmul.f32 %v918, 0.125
    %v920 = vmul.f32 %v908, %v908
    %v921 = vrot.slane %v920, 4
    %v922 = vadd.f32 %v920, %v921
    %v923 = vrot.slane %v922, 2
    %v924 = vadd.f32 %v922, %v923
    %v925 = vrot.slane %v924, 1
    %v926 = vadd.f32 %v924, %v925
    %v927 = vmul.f32 %v926, 0.125
    %v928 = vmul.f32 %v919, %v919
    %v929 = vsub.f32 %v927, %v928
    %v930 = vmax.f32 %v929, 0.0
    %v931 = vadd.f32 %v930, 1e-05
    %v932 = vrsqrt.pop %v931
    %v933 = vmul.f32 %v932, %v931
    %v934 = vmul.f32 %v933, %v932
    %v935 = vmul.f32 0.5, %v934
    %v936 = vsub.f32 1.5, %v935
    %v937 = vmul.f32 %v932, %v936
    %vm938 = vweird.f32 %v931
    %vm939 = vweird.f32 %v932
    %vm940 = vmor %vm938, %vm939
    %v941 = vsel %vm940, %v932, %v937
    %v942 = vmul.f32 %v911, %v941
    %v943 = vmul.f32 %v919, %v942
    %v944 = vsub.f32 %v912, %v943
    %v945 = vperm.slane %v942, 0
    %v946 = vmul.f32 %v908, %v945
    %v947 = vperm.slane %v944, 0
    %v948 = vadd.f32 %v946, %v947
    %vm949 = vcmp.gt.f32.partialorder %v948, 0.0
    %v950 = vmul.f32 %v948, 0.1
    %v951 = vsel %vm949, %v948, %v950
    %v952 = vpack.c.bf16 %v951, %v951
    %v953 = vld [vmem:[%s6] sm:$0xf]
    %v954 = vld [vmem:[%s6 + $0x4] sm:$0xf]
    %v955 = vld [vmem:[%s6 + $0x8] sm:$0xf]
    %v956 = vld [vmem:[%s6 + $0xc] sm:$0xf]
    %v957 = vld [vmem:[%s6 + $0x10] sm:$0xf]
    %v958 = vld [vmem:[%s6 + $0x14] sm:$0xf]
    %v959 = vld [vmem:[%s6 + $0x18] sm:$0xf]
    %v960 = vld [vmem:[%s6 + $0x1c] sm:$0xf]
    %v961 = vld [vmem:[%s6 + $0x20] sm:$0xf]
    %v962 = vld [vmem:[%s6 + $0x24] sm:$0xf]
    %v963 = vld [vmem:[%s6 + $0x28] sm:$0xf]
    %v964 = vld [vmem:[%s6 + $0x2c] sm:$0xf]
    %v965 = vld [vmem:[%s6 + $0x30] sm:$0xf]
    %v966 = vld [vmem:[%s6 + $0x34] sm:$0xf]
    %v967 = vld [vmem:[%s6 + $0x38] sm:$0xf]
    %v968 = vld [vmem:[%s6 + $0x3c] sm:$0xf]
    %v985 = vunpack.c.l.b16 %v953
    %v986 = vunpack.c.l.b16 %v954
    %v987 = vunpack.c.l.b16 %v955
    %v988 = vunpack.c.l.b16 %v956
    %v989 = vunpack.c.l.b16 %v957
    %v990 = vunpack.c.l.b16 %v958
    %v991 = vunpack.c.l.b16 %v959
    %v992 = vunpack.c.l.b16 %v960
    %v993 = vunpack.c.l.b16 %v961
    %v994 = vunpack.c.l.b16 %v962
    %v995 = vunpack.c.l.b16 %v963
    %v996 = vunpack.c.l.b16 %v964
    %v997 = vunpack.c.l.b16 %v965
    %v998 = vunpack.c.l.b16 %v966
    %v999 = vunpack.c.l.b16 %v967
    %v1000 = vunpack.c.l.b16 %v968
    %v1001 = vpack.c.b16 %v986, %v985
    %v1002 = vpack.c.b16 %v988, %v987
    %v1003 = vpack.c.b16 %v990, %v989
    %v1004 = vpack.c.b16 %v992, %v991
    %v1005 = vpack.c.b16 %v994, %v993
    %v1006 = vpack.c.b16 %v996, %v995
    %v1007 = vpack.c.b16 %v998, %v997
    %v1008 = vpack.c.b16 %v1000, %v999
    %1017 = vmatpush.bf16.msra.mxu0 %v1008
    %1018 = vmatpush.bf16.msra.mxu0 %v1007
    %1019 = vmatpush.bf16.msra.mxu0 %v1006
    %1020 = vmatpush.bf16.msra.mxu0 %v1005
    %1021 = vmatpush.bf16.msra.mxu0 %v1004
    %1022 = vmatpush.bf16.msra.mxu0 %v1003
    %1023 = vmatpush.bf16.msra.mxu0 %v1002
    %1024 = vmatpush.bf16.msra.mxu0 %v1001
    %1025 = vmatmul.bf16.gmra.mxu0 %v952
    %v1026 = vpop.f32.mrf.mxu0
    %v1027 = vadd.f32 0.0, %v1026
    %v1028 = vpop.f32.mrf.mxu0
    %1029 = vdwg.mxu0
    %v1030 = vld [vmem:[%s8 + $0xe] sm:$0x1]
    %v1031 = vld [vmem:[%s8 + $0xf] sm:$0x1]
    %v1032 = vsel %vm820, %v1027, 0.0
    %v1033 = vrot.slane %v1032, 4
    %v1034 = vadd.f32 %v1032, %v1033
    %v1035 = vrot.slane %v1034, 2
    %v1036 = vadd.f32 %v1034, %v1035
    %v1037 = vrot.slane %v1036, 1
    %v1038 = vadd.f32 %v1036, %v1037
    %v1039 = vmul.f32 %v1038, 0.125
    %v1040 = vmul.f32 %v1027, %v1027
    %v1041 = vsel %vm820, %v1040, 0.0
    %v1042 = vrot.slane %v1041, 4
    %v1043 = vadd.f32 %v1041, %v1042
    %v1044 = vrot.slane %v1043, 2
    %v1045 = vadd.f32 %v1043, %v1044
    %v1046 = vrot.slane %v1045, 1
    %v1047 = vadd.f32 %v1045, %v1046
    %v1048 = vmul.f32 %v1047, 0.125
    %v1049 = vmul.f32 %v1039, %v1039
    %v1050 = vsub.f32 %v1048, %v1049
    %v1051 = vmax.f32 %v1050, 0.0
    %v1052 = vadd.f32 %v1051, 1e-05
    %v1053 = vrsqrt.pop %v1052
    %v1054 = vmul.f32 %v1053, %v1052
    %v1055 = vmul.f32 %v1054, %v1053
    %v1056 = vmul.f32 0.5, %v1055
    %v1057 = vsub.f32 1.5, %v1056
    %v1058 = vmul.f32 %v1053, %v1057
    %vm1059 = vweird.f32 %v1052
    %vm1060 = vweird.f32 %v1053
    %vm1061 = vmor %vm1059, %vm1060
    %v1062 = vsel %vm1061, %v1053, %v1058
    %v1063 = vmul.f32 %v1030, %v1062
    %v1064 = vmul.f32 %v1039, %v1063
    %v1065 = vsub.f32 %v1031, %v1064
    %v1066 = vperm.slane %v1063, 0
    %v1067 = vmul.f32 %v1027, %v1066
    %v1068 = vperm.slane %v1065, 0
    %v1069 = vadd.f32 %v1067, %v1068
    %vm1070 = vcmp.gt.f32.partialorder %v1069, 0.0
    %v1071 = vmul.f32 %v1069, 0.1
    %v1072 = vsel %vm1070, %v1069, %v1071
    %v1073 = vld [vmem:[%s8 + $0x10] sm:$0x1]
    %v1074 = vld [vmem:[%s7] sm:$0xff]
    %v1075 = vld [vmem:[%s7 + $0x8] sm:$0xff]
    %v1076 = vld [vmem:[%s7 + $0x10] sm:$0xff]
    %v1077 = vld [vmem:[%s7 + $0x18] sm:$0xff]
    %v1078 = vld [vmem:[%s7 + $0x20] sm:$0xff]
    %v1079 = vld [vmem:[%s7 + $0x28] sm:$0xff]
    %v1080 = vld [vmem:[%s7 + $0x30] sm:$0xff]
    %v1081 = vld [vmem:[%s7 + $0x38] sm:$0xff]
    %v1082 = vperm.slane %v1073, 0
    %v1084 = vsel %vm820, %v1072, 0
    %1086 = vmatpush.msra.mxu0 0.0
    %1087 = vmatpush.msra.mxu0 0.0
    %1088 = vmatpush.msra.mxu0 0.0
    %1089 = vmatpush.msra.mxu0 0.0
    %1090 = vmatpush.msra.mxu0 0.0
    %1091 = vmatpush.msra.mxu0 0.0
    %1092 = vmatpush.msra.mxu0 0.0
    %1093 = vmatpush.msra.mxu0 0.0
    %1094 = vmatpush.msra.mxu0 %v1081
    %1095 = vmatpush.msra.mxu0 %v1080
    %1096 = vmatpush.msra.mxu0 %v1079
    %1097 = vmatpush.msra.mxu0 %v1078
    %1098 = vmatpush.msra.mxu0 %v1077
    %1099 = vmatpush.msra.mxu0 %v1076
    %1100 = vmatpush.msra.mxu0 %v1075
    %1101 = vmatpush.msra.mxu0 %v1074
    %1102 = vmatmul.f32.gmra.mxu0 %v1084
    %v1103 = vpop.f32.mrf.mxu0
    %v1104 = vadd.f32 %v1082, %v1103
    %1105 = vdwg.mxu0
    %vm1106 = vcmask 31744
    %1107 = vst.msk [vmem:[%s9] sm:$0xff] %vm1106, %v1104
    // Predicated region
    $region42: #{tpu_custom_call.1} parent=1 // pred_check
      _
    $region43: #{tpu_custom_call.1} parent=1 // pred_check_branch
      %1109 = sbr.rel (0) target = $region45
    $region44: #{tpu_custom_call.1} parent=1 // pred_region
      _
    $region45: #{tpu_custom_call.1} parent=1 // pred_fallthru
      _
    // Predicated region
    $region46: #{tpu_custom_call.1} parent=1 // pred_check
      _
    $region47: #{tpu_custom_call.1} parent=1 // pred_check_branch
      %1111 = sbr.rel (0) target = $region49
    $region48: #{tpu_custom_call.1} parent=1 // pred_region
      _
    $region49: #{tpu_custom_call.1} parent=1 // pred_fallthru
      _
    %1112 = vsyncpa [#allocation3], 1

</llo_original>
